<compile_context>
chip_gen: v7x
topology: tpu7x:2x2x1
jax: 0.10.0
libtpu: 0.0.40
codegen_flags: <defaults>
</compile_context>

<pallas_src>
import functools

import jax
import jax.numpy as jnp
from jax.experimental import pallas as pl
from jax.experimental.pallas import tpu as pltpu

LANE = 128            # hidden feature dims padded to a multiple of this
ROW_ALIGN = 16        # bf16 packs 2 rows/sublane -> 16-row batch granularity
COMPUTE_DTYPE = jnp.bfloat16


def _round_up(v, m):
    return (v + m - 1) // m * m


def _cdiv(a, b):
    return -(-a // b)


@functools.lru_cache(maxsize=None)
def _buffered_supported():
    """One-time capability check for BlockSpec(pipeline_mode=pl.Buffered(...))."""
    try:
        pl.BlockSpec((8, LANE), lambda i: (0, 0), pipeline_mode=pl.Buffered(1))
        return True
    except Exception:
        return False


@functools.lru_cache(maxsize=None)
def _tpu_info():
    """(tensorcores_per_chip, vmem_capacity_bytes) with conservative fallbacks."""
    n_tc, vmem = 1, 64 << 20
    try:
        info = pltpu.get_tpu_info()
        vmem = int(getattr(info, "vmem_capacity_bytes", vmem))
    except Exception:
        pass
    try:
        kind = jax.devices()[0].device_kind.lower()
        if "v7" in kind or "7x" in kind:
            n_tc = 2              # v7x: 2 TensorCores per chip
    except Exception:
        pass
    return n_tc, vmem


def _pick_tile(n, num_tc):
    """Batch tile size (rows)."""
    n_al = _round_up(max(n, 1), ROW_ALIGN)
    if num_tc <= 1 or n_al < 2 * ROW_ALIGN:
        # Single TC: the grid is a serial loop -> one big tile for small
        # batches, cap at 1024 rows for large ones (amortizes per-step overhead).
        return min(n_al, 1024)
    # 2 TCs (v7x): even number of balanced steps so neither core idles on the
    # last step; >= 256 rows per step when the batch allows.
    tile = min(_round_up(_cdiv(n_al, 2), ROW_ALIGN), 512)
    steps = _cdiv(n_al, tile)
    if steps % 2:
        steps += 1
    tile = _round_up(_cdiv(n_al, steps), ROW_ALIGN)
    return max(tile, ROW_ALIGN)


def prepare_nnet_params(weights, biases, compute_dtype=COMPUTE_DTYPE):
    """Pad / cast NNet parameters ONCE for the Pallas kernel.

    Hidden feature dims are zero-padded to 128-lane multiples; the first layer's
    input dim and the final output dim stay unpadded.  Weights -> bf16 (MXU
    operands), biases stay float32 (added post-accumulation).  Zero pads are
    exact, so results are unchanged.
    """
    n_layers = len(weights)
    ws, bs = [], []
    for li, (w, b) in enumerate(zip(weights, biases)):
        d_in, d_out = w.shape
        d_in_p = d_in if li == 0 else _round_up(d_in, LANE)
        d_out_p = d_out if li == n_layers - 1 else _round_up(d_out, LANE)
        w_p = jnp.zeros((d_in_p, d_out_p), compute_dtype).at[:d_in, :d_out].set(
            w.astype(compute_dtype))
        b_p = jnp.zeros((1, d_out_p), jnp.float32).at[:, :d_out].set(
            b.astype(jnp.float32))
        ws.append(w_p)
        bs.append(b_p)
    return tuple(ws), tuple(bs)


def _mlp_kernel(n_layers, x_ref, *refs):
    """Fused MLP forward for one batch tile.

    refs = (w0, b0, w1, b1, ..., w_out, b_out, out_ref).  Weights/biases are
    VMEM-resident across grid steps; only the X / out batch tiles move.
    """
    out_ref = refs[-1]
    params = refs[:-1]

    h = x_ref[...]                                        # [tile_n, d_in] bf16
    for i in range(n_layers - 1):
        w = params[2 * i][...]                            # [d_in(_pad), h_pad] bf16
        b = params[2 * i + 1][...]                        # [1, h_pad] f32
        z = jnp.dot(h, w, preferred_element_type=jnp.float32) + b
        # ReLU; Dropout(p=0.0 default / eval mode) == identity.
        # TODO(synk): training-mode Dropout(p>0) would need pltpu.prng_seed +
        #             pltpu.prng_random_bits; not needed for forward semantics.
        h = jnp.maximum(z, 0.0).astype(w.dtype)
    y = jnp.dot(h, params[-2][...], preferred_element_type=jnp.float32)
    out_ref[...] = (y + params[-1][...]).astype(out_ref.dtype)


@jax.jit
def nnet_forward(x, padded_weights, padded_biases):
    """NNet forward with one fused pallas_call.

    x: [N, n_inputs] float32; padded_* from prepare_nnet_params.
    Returns [N, n_outputs] float32.
    """
    n, d_in = x.shape
    n_layers = len(padded_weights)
    d_out = padded_weights[-1].shape[1]

    num_tc, vmem_cap = _tpu_info()
    tile_n = _pick_tile(n, num_tc)
    n_pad = _round_up(n, tile_n)

    x_c = x.astype(COMPUTE_DTYPE)
    if n_pad != n:
        x_c = jnp.pad(x_c, ((0, n_pad - n), (0, 0)))      # fuses under jit

    params = []
    for w, b in zip(padded_weights, padded_biases):
        params += [w, b]

    param_bytes = sum(int(p.size) * p.dtype.itemsize for p in params)
    in_tile_bytes = tile_n * d_in * x_c.dtype.itemsize
    out_tile_bytes = tile_n * d_out * 4
    # TODO(synk): if resident params ever exceed VMEM (huge hidden dims on
    #             v7x's 64 MiB), fall back to a K/N-tiled weight grid.
    single_buffer = _buffered_supported() and param_bytes > (4 << 20)

    buf_factor = 1 if single_buffer else 2
    vmem_limit = (buf_factor * param_bytes
                  + 2 * (in_tile_bytes + out_tile_bytes) + (2 << 20))
    vmem_limit = int(max(min(vmem_limit, int(0.75 * vmem_cap), 100 << 20), 4 << 20))

    def resident_spec(shape):
        idx = lambda i: (0,) * len(shape)
        if single_buffer:
            # Constant-index weights never change block -> one buffer suffices
            # (halves resident-weight VMEM; matters on v7x for big nets).
            return pl.BlockSpec(shape, idx, pipeline_mode=pl.Buffered(1))
        return pl.BlockSpec(shape, idx)

    in_specs = [pl.BlockSpec((tile_n, d_in), lambda i: (i, 0))]
    for p in params:
        in_specs.append(resident_spec(p.shape))

    flops = 2 * n_pad * sum(w.shape[0] * w.shape[1] for w in padded_weights)
    bytes_accessed = (int(x_c.size) * x_c.dtype.itemsize
                      + n_pad * d_out * 4 + param_bytes)
    cost = pl.CostEstimate(flops=flops, transcendentals=0,
                           bytes_accessed=bytes_accessed)

    y_pad = pl.pallas_call(
        functools.partial(_mlp_kernel, n_layers),
        out_shape=jax.ShapeDtypeStruct((n_pad, d_out), jnp.float32),
        grid=(n_pad // tile_n,),
        in_specs=in_specs,
        out_specs=pl.BlockSpec((tile_n, d_out), lambda i: (i, 0)),
        compiler_params=pltpu.CompilerParams(
            dimension_semantics=("parallel",),
            vmem_limit_bytes=vmem_limit,
        ),
        cost_estimate=cost,
    )(x_c, *params)

    return y_pad[:n, :]


def init_nnet_params(key, n_inputs, n_hiddens_per_layer, n_outputs):
    """nn.Linear-style init (U(-1/sqrt(fan_in), +)); PyTorch stores weight as
    [out, in], we store the transpose [in, out]."""
    weights, biases = [], []
    d_in = n_inputs
    for d_out in list(n_hiddens_per_layer) + [n_outputs]:
        key, kw, kb = jax.random.split(key, 3)
        bound = 1.0 / float(d_in) ** 0.5
        w = jax.random.uniform(kw, (d_in, d_out), jnp.float32, -bound, bound)
        b = jax.random.uniform(kb, (1, d_out), jnp.float32, -bound, bound)
        weights.append(w)
        biases.append(b)
        d_in = d_out
    return weights, biases


def nnet_forward_ref(x, weights, biases):
    """Pure-JAX reference mirroring the kernel's bf16-operand / f32-accum math."""
    h = x.astype(COMPUTE_DTYPE)
    for w, b in zip(weights[:-1], biases[:-1]):
        z = jnp.dot(h, w.astype(COMPUTE_DTYPE),
                    preferred_element_type=jnp.float32) + b
        h = jnp.maximum(z, 0.0).astype(COMPUTE_DTYPE)
    return jnp.dot(h, weights[-1].astype(COMPUTE_DTYPE),
                   preferred_element_type=jnp.float32) + biases[-1]


if __name__ == "__main__":
    # NNet(n_inputs=32, n_hiddens_per_layer=[64, 32], n_outputs=1)
    n_inputs, n_hiddens_per_layer, n_outputs = 32, [64, 32], 1
    batch = 256

    key = jax.random.PRNGKey(0)
    key, kx = jax.random.split(key)
    x = jax.random.normal(kx, (batch, n_inputs), jnp.float32)

    weights, biases = init_nnet_params(key, n_inputs, n_hiddens_per_layer, n_outputs)
    pw, pb = prepare_nnet_params(weights, biases)   # padded ONCE, reused per call

    y = jax.block_until_ready(nnet_forward(x, pw, pb))

    y_ref = nnet_forward_ref(x, weights, biases)
    assert y.shape == (batch, n_outputs)
    assert jnp.allclose(y, y_ref, atol=1e-2, rtol=1e-2), "mismatch vs JAX reference"

    print("KERNEL_OK")
</pallas_src>

<mosaic_0001>
module attributes {stable_mosaic.version = 11 : i64} {
  func.func @_mlp_kernel(%arg0: i32, %arg1: memref<256x32xbf16, #tpu.memory_space<vmem>>, %arg2: memref<32x128xbf16, #tpu.memory_space<vmem>>, %arg3: memref<1x128xf32, #tpu.memory_space<vmem>>, %arg4: memref<128x128xbf16, #tpu.memory_space<vmem>>, %arg5: memref<1x128xf32, #tpu.memory_space<vmem>>, %arg6: memref<128x1xbf16, #tpu.memory_space<vmem>>, %arg7: memref<1x1xf32, #tpu.memory_space<vmem>>, %arg8: memref<256x1xf32, #tpu.memory_space<vmem>>) attributes {dimension_semantics = [#tpu.dimension_semantics<parallel>], iteration_bounds = array<i64: 1>, scalar_prefetch = 0 : i64, scratch_operands = 0 : i64, tpu.core_type = #tpu.core_type<tc>, window_params = [{transform_indices = @transform_0, window_bounds = array<i64: 256, 32>}, {pipeline_mode = #tpu.pipeline_mode<synchronous>, transform_indices = @transform_1, window_bounds = array<i64: 32, 128>}, {pipeline_mode = #tpu.pipeline_mode<synchronous>, transform_indices = @transform_2, window_bounds = array<i64: 1, 128>}, {pipeline_mode = #tpu.pipeline_mode<synchronous>, transform_indices = @transform_3, window_bounds = array<i64: 128, 128>}, {pipeline_mode = #tpu.pipeline_mode<synchronous>, transform_indices = @transform_4, window_bounds = array<i64: 1, 128>}, {pipeline_mode = #tpu.pipeline_mode<synchronous>, transform_indices = @transform_5, window_bounds = array<i64: 128, 1>}, {pipeline_mode = #tpu.pipeline_mode<synchronous>, transform_indices = @transform_6, window_bounds = array<i64: 1, 1>}, {transform_indices = @transform_7, window_bounds = array<i64: 256, 1>}]} {
    %c0 = arith.constant 0 : index
    %c0_0 = arith.constant 0 : index
    %0 = vector.load %arg1[%c0, %c0_0] : memref<256x32xbf16, #tpu.memory_space<vmem>>, vector<256x32xbf16>
    %c0_1 = arith.constant 0 : index
    %c0_2 = arith.constant 0 : index
    %1 = vector.load %arg2[%c0_1, %c0_2] : memref<32x128xbf16, #tpu.memory_space<vmem>>, vector<32x128xbf16>
    %c0_3 = arith.constant 0 : index
    %c0_4 = arith.constant 0 : index
    %2 = vector.load %arg3[%c0_3, %c0_4] : memref<1x128xf32, #tpu.memory_space<vmem>>, vector<1x128xf32>
    %cst = arith.constant dense<0.000000e+00> : vector<256x128xf32>
    %3 = tpu.matmul %0, %1, %cst {dimension_numbers = #tpu.dot_dimension_numbers<[1], [0], [0], [1], [0, 0, 1, 1], [], []>} : vector<256x32xbf16>, vector<32x128xbf16>, vector<256x128xf32> -> vector<256x128xf32>
    %4 = vector.broadcast %2 : vector<1x128xf32> to vector<256x128xf32>
    %5 = arith.addf %3, %4 : vector<256x128xf32>
    %cst_5 = arith.constant 0.000000e+00 : f32
    %6 = vector.broadcast %cst_5 : f32 to vector<256x128xf32>
    %7 = arith.maximumf %5, %6 : vector<256x128xf32>
    %8 = arith.truncf %7 : vector<256x128xf32> to vector<256x128xbf16>
    %c0_6 = arith.constant 0 : index
    %c0_7 = arith.constant 0 : index
    %9 = vector.load %arg4[%c0_6, %c0_7] : memref<128x128xbf16, #tpu.memory_space<vmem>>, vector<128x128xbf16>
    %c0_8 = arith.constant 0 : index
    %c0_9 = arith.constant 0 : index
    %10 = vector.load %arg5[%c0_8, %c0_9] : memref<1x128xf32, #tpu.memory_space<vmem>>, vector<1x128xf32>
    %cst_10 = arith.constant dense<0.000000e+00> : vector<256x128xf32>
    %11 = tpu.matmul %8, %9, %cst_10 {dimension_numbers = #tpu.dot_dimension_numbers<[1], [0], [0], [1], [0, 0, 1, 1], [], []>} : vector<256x128xbf16>, vector<128x128xbf16>, vector<256x128xf32> -> vector<256x128xf32>
    %12 = vector.broadcast %10 : vector<1x128xf32> to vector<256x128xf32>
    %13 = arith.addf %11, %12 : vector<256x128xf32>
    %cst_11 = arith.constant 0.000000e+00 : f32
    %14 = vector.broadcast %cst_11 : f32 to vector<256x128xf32>
    %15 = arith.maximumf %13, %14 : vector<256x128xf32>
    %16 = arith.truncf %15 : vector<256x128xf32> to vector<256x128xbf16>
    %c0_12 = arith.constant 0 : index
    %c0_13 = arith.constant 0 : index
    %17 = vector.load %arg6[%c0_12, %c0_13] : memref<128x1xbf16, #tpu.memory_space<vmem>>, vector<128x1xbf16>
    %cst_14 = arith.constant dense<0.000000e+00> : vector<256x1xf32>
    %18 = tpu.matmul %16, %17, %cst_14 {dimension_numbers = #tpu.dot_dimension_numbers<[1], [0], [0], [1], [0, 0, 1, 1], [], []>} : vector<256x128xbf16>, vector<128x1xbf16>, vector<256x1xf32> -> vector<256x1xf32>
    %c0_15 = arith.constant 0 : index
    %c0_16 = arith.constant 0 : index
    %19 = vector.load %arg7[%c0_15, %c0_16] : memref<1x1xf32, #tpu.memory_space<vmem>>, vector<1x1xf32>
    %20 = vector.broadcast %19 : vector<1x1xf32> to vector<256x1xf32>
    %21 = arith.addf %18, %20 : vector<256x1xf32>
    %c0_17 = arith.constant 0 : index
    %c0_18 = arith.constant 0 : index
    %22 = vector.load %arg8[%c0_17, %c0_18] : memref<256x1xf32, #tpu.memory_space<vmem>>, vector<256x1xf32>
    tpu.vector_store %arg8[%c0_17, %c0_18], %21 {strides = array<i32>} : memref<256x1xf32, #tpu.memory_space<vmem>>, vector<256x1xf32>,
    return
  }
  func.func @transform_0(%arg0: i32) -> (i32, i32) {
    %c0_i32 = arith.constant 0 : i32
    %c0_i32_0 = arith.constant 0 : i32
    return %arg0, %c0_i32 : i32, i32
  }
  func.func @transform_1(%arg0: i32) -> (i32, i32) {
    %c0_i32 = arith.constant 0 : i32
    %c0_i32_0 = arith.constant 0 : i32
    %c0_i32_1 = arith.constant 0 : i32
    return %c0_i32, %c0_i32_0 : i32, i32
  }
  func.func @transform_2(%arg0: i32) -> (i32, i32) {
    %c0_i32 = arith.constant 0 : i32
    %c0_i32_0 = arith.constant 0 : i32
    %c0_i32_1 = arith.constant 0 : i32
    return %c0_i32, %c0_i32_0 : i32, i32
  }
  func.func @transform_3(%arg0: i32) -> (i32, i32) {
    %c0_i32 = arith.constant 0 : i32
    %c0_i32_0 = arith.constant 0 : i32
    %c0_i32_1 = arith.constant 0 : i32
    return %c0_i32, %c0_i32_0 : i32, i32
  }
  func.func @transform_4(%arg0: i32) -> (i32, i32) {
    %c0_i32 = arith.constant 0 : i32
    %c0_i32_0 = arith.constant 0 : i32
    %c0_i32_1 = arith.constant 0 : i32
    return %c0_i32, %c0_i32_0 : i32, i32
  }
  func.func @transform_5(%arg0: i32) -> (i32, i32) {
    %c0_i32 = arith.constant 0 : i32
    %c0_i32_0 = arith.constant 0 : i32
    %c0_i32_1 = arith.constant 0 : i32
    return %c0_i32, %c0_i32_0 : i32, i32
  }
  func.func @transform_6(%arg0: i32) -> (i32, i32) {
    %c0_i32 = arith.constant 0 : i32
    %c0_i32_0 = arith.constant 0 : i32
    %c0_i32_1 = arith.constant 0 : i32
    return %c0_i32, %c0_i32_0 : i32, i32
  }
  func.func @transform_7(%arg0: i32) -> (i32, i32) {
    %c0_i32 = arith.constant 0 : i32
    %c0_i32_0 = arith.constant 0 : i32
    return %arg0, %c0_i32 : i32, i32
  }
}

</mosaic_0001>

<llo_original>
// kernel: nnet_forward.1
$region0: #{nnet_forward.1}
  #allocation0 [shape = 'u32[]', space=smem, size = 0x4, offset = 0x4, fixed_abs, tag = 'smem constant byte address 0x4 - core index']
  #allocation1 [shape = 'u32[144,128]{1,0:T(1,128)}', space=vmem, size = 0x12000, scoped, tag = 'internal scratch']
  #allocation2 [shape = 'f32[1,1]{1,0:T(1,128)S(1)}', space=vmem, size = 0x200, scoped, tag = 'scoped memory for nnet_forward.1']
  %s0 = inlined_call_operand.vmem [shape: bf16[256,32], index: 0, kind: input, shape index: {}]
  %s1 = inlined_call_operand.vmem [shape: bf16[32,128], index: 1, kind: input, shape index: {}]
  %s2 = inlined_call_operand.vmem [shape: f32[1,128], index: 2, kind: input, shape index: {}]
  %s3 = inlined_call_operand.vmem [shape: bf16[128,128], index: 3, kind: input, shape index: {}]
  %s4 = inlined_call_operand.vmem [shape: f32[1,128], index: 4, kind: input, shape index: {}]
  %s5 = inlined_call_operand.vmem [shape: bf16[128,1], index: 5, kind: input, shape index: {}]
  %s6 = inlined_call_operand.<no memory space> [shape: f32[1,1], index: 6, kind: input, shape index: {}]
  %s7 = inlined_call_operand.vmem [shape: f32[256,1], index: 7, kind: output, shape index: {}]
  %s8 = sld [smem:[#allocation0]]
  $region38: #{nnet_forward.1} parent=0
    _
  %s10 = ssub.s32 1, %s8
  %s11 = scalar_select 0, %s10, %s8
  %v12 = vstv %s6
  %13 = vst [vmem:[#allocation2] sm:$0x1] %v12
  // Predicated region
  $region2: #{nnet_forward.1} parent=0 // pred_check
    _
  $region3: #{nnet_forward.1} parent=0 // pred_check_branch
    %15 = sbr.rel (0) target = $region5
  $region4: #{nnet_forward.1} parent=0 // pred_region
    _
  $region5: #{nnet_forward.1} parent=0 // pred_fallthru
    _
  // Predicated region
  $region6: #{nnet_forward.1} parent=0 // pred_check
    _
  $region7: #{nnet_forward.1} parent=0 // pred_check_branch
    %17 = sbr.rel (0) target = $region9
  $region8: #{nnet_forward.1} parent=0 // pred_region
    _
  $region9: #{nnet_forward.1} parent=0 // pred_fallthru
    _
  // Predicated region
  $region10: #{nnet_forward.1} parent=0 // pred_check
    _
  $region11: #{nnet_forward.1} parent=0 // pred_check_branch
    %19 = sbr.rel (0) target = $region13
  $region12: #{nnet_forward.1} parent=0 // pred_region
    _
  $region13: #{nnet_forward.1} parent=0 // pred_fallthru
    _
  // Predicated region
  $region14: #{nnet_forward.1} parent=0 // pred_check
    _
  $region15: #{nnet_forward.1} parent=0 // pred_check_branch
    %21 = sbr.rel (0) target = $region17
  $region16: #{nnet_forward.1} parent=0 // pred_region
    _
  $region17: #{nnet_forward.1} parent=0 // pred_fallthru
    _
  // Predicated region
  $region18: #{nnet_forward.1} parent=0 // pred_check
    _
  $region19: #{nnet_forward.1} parent=0 // pred_check_branch
    %23 = sbr.rel (0) target = $region21
  $region20: #{nnet_forward.1} parent=0 // pred_region
    _
  $region21: #{nnet_forward.1} parent=0 // pred_fallthru
    _
  // Predicated region
  $region22: #{nnet_forward.1} parent=0 // pred_check
    _
  $region23: #{nnet_forward.1} parent=0 // pred_check_branch
    %25 = sbr.rel (0) target = $region25
  $region24: #{nnet_forward.1} parent=0 // pred_region
    _
  $region25: #{nnet_forward.1} parent=0 // pred_fallthru
    _
  // Predicated region
  $region26: #{nnet_forward.1} parent=0 // pred_check
    _
  $region27: #{nnet_forward.1} parent=0 // pred_check_branch
    %27 = sbr.rel (0) target = $region29
  $region28: #{nnet_forward.1} parent=0 // pred_region
    _
  $region29: #{nnet_forward.1} parent=0 // pred_fallthru
    _
  %v29 = vld [vmem:[%s0] sm:$0xf]
  %v30 = vld [vmem:[%s0 + $0x4] sm:$0xf]
  %v31 = vld [vmem:[%s0 + $0x8] sm:$0xf]
  %v32 = vld [vmem:[%s0 + $0xc] sm:$0xf]
  %v33 = vld [vmem:[%s0 + $0x10] sm:$0xf]
  %v34 = vld [vmem:[%s0 + $0x14] sm:$0xf]
  %v35 = vld [vmem:[%s0 + $0x18] sm:$0xf]
  %v36 = vld [vmem:[%s0 + $0x1c] sm:$0xf]
  %v37 = vld [vmem:[%s0 + $0x20] sm:$0xf]
  %v38 = vld [vmem:[%s0 + $0x24] sm:$0xf]
  %v39 = vld [vmem:[%s0 + $0x28] sm:$0xf]
  %v40 = vld [vmem:[%s0 + $0x2c] sm:$0xf]
  %v41 = vld [vmem:[%s0 + $0x30] sm:$0xf]
  %v42 = vld [vmem:[%s0 + $0x34] sm:$0xf]
  %v43 = vld [vmem:[%s0 + $0x38] sm:$0xf]
  %v44 = vld [vmem:[%s0 + $0x3c] sm:$0xf]
  %v45 = vld [vmem:[%s0 + $0x40] sm:$0xf]
  %v46 = vld [vmem:[%s0 + $0x44] sm:$0xf]
  %v47 = vld [vmem:[%s0 + $0x48] sm:$0xf]
  %v48 = vld [vmem:[%s0 + $0x4c] sm:$0xf]
  %v49 = vld [vmem:[%s0 + $0x50] sm:$0xf]
  %v50 = vld [vmem:[%s0 + $0x54] sm:$0xf]
  %v51 = vld [vmem:[%s0 + $0x58] sm:$0xf]
  %v52 = vld [vmem:[%s0 + $0x5c] sm:$0xf]
  %v53 = vld [vmem:[%s0 + $0x60] sm:$0xf]
  %v54 = vld [vmem:[%s0 + $0x64] sm:$0xf]
  %v55 = vld [vmem:[%s0 + $0x68] sm:$0xf]
  %v56 = vld [vmem:[%s0 + $0x6c] sm:$0xf]
  %v57 = vld [vmem:[%s0 + $0x70] sm:$0xf]
  %v58 = vld [vmem:[%s0 + $0x74] sm:$0xf]
  %v59 = vld [vmem:[%s0 + $0x78] sm:$0xf]
  %v60 = vld [vmem:[%s0 + $0x7c] sm:$0xf]
  %v61 = vld [vmem:[%s1] sm:$0xf]
  %v62 = vld [vmem:[%s1 + $0x4] sm:$0xf]
  %v63 = vld [vmem:[%s1 + $0x8] sm:$0xf]
  %v64 = vld [vmem:[%s1 + $0xc] sm:$0xf]
  %v65 = vld [vmem:[%s2] sm:$0x1]
  %v67 = vlaneseq
  %v68 = vshrl.u32 %v67, 7
  %v69 = vsub.s32 0, %v68
  %v70 = vrot.slane %v65, %v69
  %v104 = vunpack.c.l.b16 %v29
  %v105 = vunpack.c.l.b16 %v30
  %v106 = vunpack.c.l.b16 %v31
  %v107 = vunpack.c.l.b16 %v32
  %v108 = vunpack.c.l.b16 %v33
  %v109 = vunpack.c.l.b16 %v34
  %v110 = vunpack.c.l.b16 %v35
  %v111 = vunpack.c.l.b16 %v36
  %v112 = vunpack.c.l.b16 %v37
  %v113 = vunpack.c.l.b16 %v38
  %v114 = vunpack.c.l.b16 %v39
  %v115 = vunpack.c.l.b16 %v40
  %v116 = vunpack.c.l.b16 %v41
  %v117 = vunpack.c.l.b16 %v42
  %v118 = vunpack.c.l.b16 %v43
  %v119 = vunpack.c.l.b16 %v44
  %v120 = vunpack.c.l.b16 %v45
  %v121 = vunpack.c.l.b16 %v46
  %v122 = vunpack.c.l.b16 %v47
  %v123 = vunpack.c.l.b16 %v48
  %v124 = vunpack.c.l.b16 %v49
  %v125 = vunpack.c.l.b16 %v50
  %v126 = vunpack.c.l.b16 %v51
  %v127 = vunpack.c.l.b16 %v52
  %v128 = vunpack.c.l.b16 %v53
  %v129 = vunpack.c.l.b16 %v54
  %v130 = vunpack.c.l.b16 %v55
  %v131 = vunpack.c.l.b16 %v56
  %v132 = vunpack.c.l.b16 %v57
  %v133 = vunpack.c.l.b16 %v58
  %v134 = vunpack.c.l.b16 %v59
  %v135 = vunpack.c.l.b16 %v60
  %v136 = vpack.c.b16 %v105, %v104
  %v137 = vpack.c.b16 %v107, %v106
  %v138 = vpack.c.b16 %v109, %v108
  %v139 = vpack.c.b16 %v111, %v110
  %v140 = vpack.c.b16 %v113, %v112
  %v141 = vpack.c.b16 %v115, %v114
  %v142 = vpack.c.b16 %v117, %v116
  %v143 = vpack.c.b16 %v119, %v118
  %v144 = vpack.c.b16 %v121, %v120
  %v145 = vpack.c.b16 %v123, %v122
  %v146 = vpack.c.b16 %v125, %v124
  %v147 = vpack.c.b16 %v127, %v126
  %v148 = vpack.c.b16 %v129, %v128
  %v149 = vpack.c.b16 %v131, %v130
  %v150 = vpack.c.b16 %v133, %v132
  %v151 = vpack.c.b16 %v135, %v134
  %v156 = vunpack.c.l.b16 %v61
  %v157 = vunpack.c.l.b16 %v62
  %v158 = vunpack.c.l.b16 %v63
  %v159 = vunpack.c.l.b16 %v64
  %v160 = vpack.c.b16 %v157, %v156
  %v161 = vpack.c.b16 %v159, %v158
  %vm164 = vcmask 261120
  %v166 = vsel %vm164, %v136, 0
  %v169 = vsel %vm164, %v137, 0
  %v172 = vsel %vm164, %v138, 0
  %v175 = vsel %vm164, %v139, 0
  %v178 = vsel %vm164, %v140, 0
  %v181 = vsel %vm164, %v141, 0
  %v184 = vsel %vm164, %v142, 0
  %v187 = vsel %vm164, %v143, 0
  %v190 = vsel %vm164, %v144, 0
  %v193 = vsel %vm164, %v145, 0
  %v196 = vsel %vm164, %v146, 0
  %v199 = vsel %vm164, %v147, 0
  %v202 = vsel %vm164, %v148, 0
  %v205 = vsel %vm164, %v149, 0
  %v208 = vsel %vm164, %v150, 0
  %v211 = vsel %vm164, %v151, 0
  %213 = vmatprep.subr.bf16.mxu0 0
  %214 = vmatpush1.bf16.msra.mxu0 %v160
  %215 = vmatprep.subr.bf16.mxu0 0
  %216 = vmatpush1.bf16.msra.mxu0 %v161
  %217 = vmatprep.subr.bf16.mxu0 0
  %218 = vmatpush1.bf16.msra.mxu0 0
  %219 = vmatprep.subr.bf16.mxu0 0
  %220 = vmatpush1.bf16.msra.mxu0 0
  %221 = vmatprep.subr.bf16.mxu0 0
  %222 = vmatpush1.bf16.msra.mxu0 0
  %223 = vmatprep.subr.bf16.mxu0 0
  %224 = vmatpush1.bf16.msra.mxu0 0
  %225 = vmatprep.subr.bf16.mxu0 0
  %226 = vmatpush1.bf16.msra.mxu0 0
  %227 = vmatprep.subr.bf16.mxu0 0
  %228 = vmatpush1.bf16.msra.mxu0 0
  %229 = vmatprep.subr.bf16.mxu0 0
  %230 = vmatpush1.bf16.msra.mxu0 0
  %231 = vmatprep.subr.bf16.mxu0 0
  %232 = vmatpush1.bf16.msra.mxu0 0
  %233 = vmatprep.subr.bf16.mxu0 0
  %234 = vmatpush1.bf16.msra.mxu0 0
  %235 = vmatprep.subr.bf16.mxu0 0
  %236 = vmatpush1.bf16.msra.mxu0 0
  %237 = vmatprep.subr.bf16.mxu0 0
  %238 = vmatpush1.bf16.msra.mxu0 0
  %239 = vmatprep.subr.bf16.mxu0 0
  %240 = vmatpush1.bf16.msra.mxu0 0
  %241 = vmatprep.subr.bf16.mxu0 0
  %242 = vmatpush1.bf16.msra.mxu0 0
  %243 = vmatprep.subr.bf16.mxu0 0
  %244 = vmatpush1.bf16.msra.mxu0 0
  %245 = vmatprep.mubr.bf16.mxu0 0
  %246 = vmatmul.mubr.bf16.gmra.mrb[0].mxu0 %v166
  %v247 = vpop.f32.mrb[0].mxu0
  %v248 = vadd.f32 %v70, %v247
  %v249 = vpop.f32.mrb[0].mxu0
  %v250 = vpop.f32.mrb[0].mxu0
  %v251 = vadd.f32 %v70, %v250
  %v252 = vpop.f32.mrb[0].mxu0
  %253 = vmatprep.mubr.bf16.mxu0 0
  %254 = vmatmul.mubr.bf16.gmra.mrb[0].mxu0 %v169
  %v255 = vpop.f32.mrb[0].mxu0
  %v256 = vadd.f32 %v70, %v255
  %v257 = vpop.f32.mrb[0].mxu0
  %v258 = vpop.f32.mrb[0].mxu0
  %v259 = vadd.f32 %v70, %v258
  %v260 = vpop.f32.mrb[0].mxu0
  %261 = vmatprep.mubr.bf16.mxu0 0
  %262 = vmatmul.mubr.bf16.gmra.mrb[0].mxu0 %v172
  %v263 = vpop.f32.mrb[0].mxu0
  %v264 = vadd.f32 %v70, %v263
  %v265 = vpop.f32.mrb[0].mxu0
  %v266 = vpop.f32.mrb[0].mxu0
  %v267 = vadd.f32 %v70, %v266
  %v268 = vpop.f32.mrb[0].mxu0
  %269 = vmatprep.mubr.bf16.mxu0 0
  %270 = vmatmul.mubr.bf16.gmra.mrb[0].mxu0 %v175
  %v271 = vpop.f32.mrb[0].mxu0
  %v272 = vadd.f32 %v70, %v271
  %v273 = vpop.f32.mrb[0].mxu0
  %v274 = vpop.f32.mrb[0].mxu0
  %v275 = vadd.f32 %v70, %v274
  %v276 = vpop.f32.mrb[0].mxu0
  %277 = vmatprep.mubr.bf16.mxu0 0
  %278 = vmatmul.mubr.bf16.gmra.mrb[0].mxu0 %v178
  %v279 = vpop.f32.mrb[0].mxu0
  %v280 = vadd.f32 %v70, %v279
  %v281 = vpop.f32.mrb[0].mxu0
  %v282 = vpop.f32.mrb[0].mxu0
  %v283 = vadd.f32 %v70, %v282
  %v284 = vpop.f32.mrb[0].mxu0
  %285 = vmatprep.mubr.bf16.mxu0 0
  %286 = vmatmul.mubr.bf16.gmra.mrb[0].mxu0 %v181
  %v287 = vpop.f32.mrb[0].mxu0
  %v288 = vadd.f32 %v70, %v287
  %v289 = vpop.f32.mrb[0].mxu0
  %v290 = vpop.f32.mrb[0].mxu0
  %v291 = vadd.f32 %v70, %v290
  %v292 = vpop.f32.mrb[0].mxu0
  %293 = vmatprep.mubr.bf16.mxu0 0
  %294 = vmatmul.mubr.bf16.gmra.mrb[0].mxu0 %v184
  %v295 = vpop.f32.mrb[0].mxu0
  %v296 = vadd.f32 %v70, %v295
  %v297 = vpop.f32.mrb[0].mxu0
  %v298 = vpop.f32.mrb[0].mxu0
  %v299 = vadd.f32 %v70, %v298
  %v300 = vpop.f32.mrb[0].mxu0
  %301 = vmatprep.mubr.bf16.mxu0 0
  %302 = vmatmul.mubr.bf16.gmra.mrb[0].mxu0 %v187
  %v303 = vpop.f32.mrb[0].mxu0
  %v304 = vadd.f32 %v70, %v303
  %v305 = vpop.f32.mrb[0].mxu0
  %v306 = vpop.f32.mrb[0].mxu0
  %v307 = vadd.f32 %v70, %v306
  %v308 = vpop.f32.mrb[0].mxu0
  %309 = vmatprep.mubr.bf16.mxu0 0
  %310 = vmatmul.mubr.bf16.gmra.mrb[0].mxu0 %v190
  %v311 = vpop.f32.mrb[0].mxu0
  %v312 = vadd.f32 %v70, %v311
  %v313 = vpop.f32.mrb[0].mxu0
  %v314 = vpop.f32.mrb[0].mxu0
  %v315 = vadd.f32 %v70, %v314
  %v316 = vpop.f32.mrb[0].mxu0
  %317 = vmatprep.mubr.bf16.mxu0 0
  %318 = vmatmul.mubr.bf16.gmra.mrb[0].mxu0 %v193
  %v319 = vpop.f32.mrb[0].mxu0
  %v320 = vadd.f32 %v70, %v319
  %v321 = vpop.f32.mrb[0].mxu0
  %v322 = vpop.f32.mrb[0].mxu0
  %v323 = vadd.f32 %v70, %v322
  %v324 = vpop.f32.mrb[0].mxu0
  %325 = vmatprep.mubr.bf16.mxu0 0
  %326 = vmatmul.mubr.bf16.gmra.mrb[0].mxu0 %v196
  %v327 = vpop.f32.mrb[0].mxu0
  %v328 = vadd.f32 %v70, %v327
  %v329 = vpop.f32.mrb[0].mxu0
  %v330 = vpop.f32.mrb[0].mxu0
  %v331 = vadd.f32 %v70, %v330
  %v332 = vpop.f32.mrb[0].mxu0
  %333 = vmatprep.mubr.bf16.mxu0 0
  %334 = vmatmul.mubr.bf16.gmra.mrb[0].mxu0 %v199
  %v335 = vpop.f32.mrb[0].mxu0
  %v336 = vadd.f32 %v70, %v335
  %v337 = vpop.f32.mrb[0].mxu0
  %v338 = vpop.f32.mrb[0].mxu0
  %v339 = vadd.f32 %v70, %v338
  %v340 = vpop.f32.mrb[0].mxu0
  %341 = vmatprep.mubr.bf16.mxu0 0
  %342 = vmatmul.mubr.bf16.gmra.mrb[0].mxu0 %v202
  %v343 = vpop.f32.mrb[0].mxu0
  %v344 = vadd.f32 %v70, %v343
  %v345 = vpop.f32.mrb[0].mxu0
  %v346 = vpop.f32.mrb[0].mxu0
  %v347 = vadd.f32 %v70, %v346
  %v348 = vpop.f32.mrb[0].mxu0
  %349 = vmatprep.mubr.bf16.mxu0 0
  %350 = vmatmul.mubr.bf16.gmra.mrb[0].mxu0 %v205
  %v351 = vpop.f32.mrb[0].mxu0
  %v352 = vadd.f32 %v70, %v351
  %v353 = vpop.f32.mrb[0].mxu0
  %v354 = vpop.f32.mrb[0].mxu0
  %v355 = vadd.f32 %v70, %v354
  %v356 = vpop.f32.mrb[0].mxu0
  %357 = vmatprep.mubr.bf16.mxu0 0
  %358 = vmatmul.mubr.bf16.gmra.mrb[0].mxu0 %v208
  %v359 = vpop.f32.mrb[0].mxu0
  %v360 = vadd.f32 %v70, %v359
  %v361 = vpop.f32.mrb[0].mxu0
  %v362 = vpop.f32.mrb[0].mxu0
  %v363 = vadd.f32 %v70, %v362
  %v364 = vpop.f32.mrb[0].mxu0
  %365 = vmatprep.mubr.bf16.mxu0 0
  %366 = vmatmul.mubr.bf16.gmra.mrb[0].mxu0 %v211
  %v367 = vpop.f32.mrb[0].mxu0
  %v368 = vadd.f32 %v70, %v367
  %v369 = vpop.f32.mrb[0].mxu0
  %v370 = vpop.f32.mrb[0].mxu0
  %v371 = vadd.f32 %v70, %v370
  %v372 = vpop.f32.mrb[0].mxu0
  %373 = vdwg.mxu0
  %v374 = vmax.f32 %v248, 0.0
  %v375 = vmax.f32 %v251, 0.0
  %v376 = vmax.f32 %v256, 0.0
  %v377 = vmax.f32 %v259, 0.0
  %v378 = vmax.f32 %v264, 0.0
  %v379 = vmax.f32 %v267, 0.0
  %v380 = vmax.f32 %v272, 0.0
  %v381 = vmax.f32 %v275, 0.0
  %v382 = vmax.f32 %v280, 0.0
  %v383 = vmax.f32 %v283, 0.0
  %v384 = vmax.f32 %v288, 0.0
  %v385 = vmax.f32 %v291, 0.0
  %v386 = vmax.f32 %v296, 0.0
  %v387 = vmax.f32 %v299, 0.0
  %v388 = vmax.f32 %v304, 0.0
  %v389 = vmax.f32 %v307, 0.0
  %v390 = vmax.f32 %v312, 0.0
  %v391 = vmax.f32 %v315, 0.0
  %v392 = vmax.f32 %v320, 0.0
  %v393 = vmax.f32 %v323, 0.0
  %v394 = vmax.f32 %v328, 0.0
  %v395 = vmax.f32 %v331, 0.0
  %v396 = vmax.f32 %v336, 0.0
  %v397 = vmax.f32 %v339, 0.0
  %v398 = vmax.f32 %v344, 0.0
  %v399 = vmax.f32 %v347, 0.0
  %v400 = vmax.f32 %v352, 0.0
  %v401 = vmax.f32 %v355, 0.0
  %v402 = vmax.f32 %v360, 0.0
  %v403 = vmax.f32 %v363, 0.0
  %v404 = vmax.f32 %v368, 0.0
  %v405 = vmax.f32 %v371, 0.0
  %v406 = vpack.c.bf16 %v375, %v374
  %v407 = vpack.c.bf16 %v377, %v376
  %v408 = vpack.c.bf16 %v379, %v378
  %v409 = vpack.c.bf16 %v381, %v380
  %v410 = vpack.c.bf16 %v383, %v382
  %v411 = vpack.c.bf16 %v385, %v384
  %v412 = vpack.c.bf16 %v387, %v386
  %v413 = vpack.c.bf16 %v389, %v388
  %v414 = vpack.c.bf16 %v391, %v390
  %v415 = vpack.c.bf16 %v393, %v392
  %v416 = vpack.c.bf16 %v395, %v394
  %v417 = vpack.c.bf16 %v397, %v396
  %v418 = vpack.c.bf16 %v399, %v398
  %v419 = vpack.c.bf16 %v401, %v400
  %v420 = vpack.c.bf16 %v403, %v402
  %v421 = vpack.c.bf16 %v405, %v404
  %v422 = vld [vmem:[%s3] sm:$0xf]
  %v423 = vld [vmem:[%s3 + $0x4] sm:$0xf]
  %v424 = vld [vmem:[%s3 + $0x8] sm:$0xf]
  %v425 = vld [vmem:[%s3 + $0xc] sm:$0xf]
  %v426 = vld [vmem:[%s3 + $0x10] sm:$0xf]
  %v427 = vld [vmem:[%s3 + $0x14] sm:$0xf]
  %v428 = vld [vmem:[%s3 + $0x18] sm:$0xf]
  %v429 = vld [vmem:[%s3 + $0x1c] sm:$0xf]
  %v430 = vld [vmem:[%s3 + $0x20] sm:$0xf]
  %v431 = vld [vmem:[%s3 + $0x24] sm:$0xf]
  %v432 = vld [vmem:[%s3 + $0x28] sm:$0xf]
  %v433 = vld [vmem:[%s3 + $0x2c] sm:$0xf]
  %v434 = vld [vmem:[%s3 + $0x30] sm:$0xf]
  %v435 = vld [vmem:[%s3 + $0x34] sm:$0xf]
  %v436 = vld [vmem:[%s3 + $0x38] sm:$0xf]
  %v437 = vld [vmem:[%s3 + $0x3c] sm:$0xf]
  %v438 = vld [vmem:[%s4] sm:$0x1]
  %v440 = vlaneseq
  %v441 = vshrl.u32 %v440, 7
  %v442 = vsub.s32 0, %v441
  %v443 = vrot.slane %v438, %v442
  %v461 = vunpack.c.l.b16 %v422
  %v462 = vunpack.c.l.b16 %v423
  %v463 = vunpack.c.l.b16 %v424
  %v464 = vunpack.c.l.b16 %v425
  %v465 = vunpack.c.l.b16 %v426
  %v466 = vunpack.c.l.b16 %v427
  %v467 = vunpack.c.l.b16 %v428
  %v468 = vunpack.c.l.b16 %v429
  %v469 = vunpack.c.l.b16 %v430
  %v470 = vunpack.c.l.b16 %v431
  %v471 = vunpack.c.l.b16 %v432
  %v472 = vunpack.c.l.b16 %v433
  %v473 = vunpack.c.l.b16 %v434
  %v474 = vunpack.c.l.b16 %v435
  %v475 = vunpack.c.l.b16 %v436
  %v476 = vunpack.c.l.b16 %v437
  %v477 = vpack.c.b16 %v462, %v461
  %v478 = vpack.c.b16 %v464, %v463
  %v479 = vpack.c.b16 %v466, %v465
  %v480 = vpack.c.b16 %v468, %v467
  %v481 = vpack.c.b16 %v470, %v469
  %v482 = vpack.c.b16 %v472, %v471
  %v483 = vpack.c.b16 %v474, %v473
  %v484 = vpack.c.b16 %v476, %v475
  %493 = vmatprep.subr.bf16.mxu0 0
  %494 = vmatpush1.bf16.msra.mxu0 %v477
  %495 = vmatprep.subr.bf16.mxu0 0
  %496 = vmatpush1.bf16.msra.mxu0 %v478
  %497 = vmatprep.subr.bf16.mxu0 0
  %498 = vmatpush1.bf16.msra.mxu0 %v479
  %499 = vmatprep.subr.bf16.mxu0 0
  %500 = vmatpush1.bf16.msra.mxu0 %v480
  %501 = vmatprep.subr.bf16.mxu0 0
  %502 = vmatpush1.bf16.msra.mxu0 %v481
  %503 = vmatprep.subr.bf16.mxu0 0
  %504 = vmatpush1.bf16.msra.mxu0 %v482
  %505 = vmatprep.subr.bf16.mxu0 0
  %506 = vmatpush1.bf16.msra.mxu0 %v483
  %507 = vmatprep.subr.bf16.mxu0 0
  %508 = vmatpush1.bf16.msra.mxu0 %v484
  %509 = vmatprep.subr.bf16.mxu0 0
  %510 = vmatpush1.bf16.msra.mxu0 0
  %511 = vmatprep.subr.bf16.mxu0 0
  %512 = vmatpush1.bf16.msra.mxu0 0
  %513 = vmatprep.subr.bf16.mxu0 0
  %514 = vmatpush1.bf16.msra.mxu0 0
  %515 = vmatprep.subr.bf16.mxu0 0
  %516 = vmatpush1.bf16.msra.mxu0 0
  %517 = vmatprep.subr.bf16.mxu0 0
  %518 = vmatpush1.bf16.msra.mxu0 0
  %519 = vmatprep.subr.bf16.mxu0 0
  %520 = vmatpush1.bf16.msra.mxu0 0
  %521 = vmatprep.subr.bf16.mxu0 0
  %522 = vmatpush1.bf16.msra.mxu0 0
  %523 = vmatprep.subr.bf16.mxu0 0
  %524 = vmatpush1.bf16.msra.mxu0 0
  %525 = vmatprep.mubr.bf16.mxu0 0
  %526 = vmatmul.mubr.bf16.gmra.mrb[0].mxu0 %v406
  %v527 = vpop.f32.mrb[0].mxu0
  %v528 = vadd.f32 %v443, %v527
  %v529 = vpop.f32.mrb[0].mxu0
  %v530 = vpop.f32.mrb[0].mxu0
  %v531 = vadd.f32 %v443, %v530
  %v532 = vpop.f32.mrb[0].mxu0
  %533 = vmatprep.mubr.bf16.mxu0 0
  %534 = vmatmul.mubr.bf16.gmra.mrb[0].mxu0 %v407
  %v535 = vpop.f32.mrb[0].mxu0
  %v536 = vadd.f32 %v443, %v535
  %v537 = vpop.f32.mrb[0].mxu0
  %v538 = vpop.f32.mrb[0].mxu0
  %v539 = vadd.f32 %v443, %v538
  %v540 = vpop.f32.mrb[0].mxu0
  %541 = vmatprep.mubr.bf16.mxu0 0
  %542 = vmatmul.mubr.bf16.gmra.mrb[0].mxu0 %v408
  %v543 = vpop.f32.mrb[0].mxu0
  %v544 = vadd.f32 %v443, %v543
  %v545 = vpop.f32.mrb[0].mxu0
  %v546 = vpop.f32.mrb[0].mxu0
  %v547 = vadd.f32 %v443, %v546
  %v548 = vpop.f32.mrb[0].mxu0
  %549 = vmatprep.mubr.bf16.mxu0 0
  %550 = vmatmul.mubr.bf16.gmra.mrb[0].mxu0 %v409
  %v551 = vpop.f32.mrb[0].mxu0
  %v552 = vadd.f32 %v443, %v551
  %v553 = vpop.f32.mrb[0].mxu0
  %v554 = vpop.f32.mrb[0].mxu0
  %v555 = vadd.f32 %v443, %v554
  %v556 = vpop.f32.mrb[0].mxu0
  %557 = vmatprep.mubr.bf16.mxu0 0
  %558 = vmatmul.mubr.bf16.gmra.mrb[0].mxu0 %v410
  %v559 = vpop.f32.mrb[0].mxu0
  %v560 = vadd.f32 %v443, %v559
  %v561 = vpop.f32.mrb[0].mxu0
  %v562 = vpop.f32.mrb[0].mxu0
  %v563 = vadd.f32 %v443, %v562
  %v564 = vpop.f32.mrb[0].mxu0
  %565 = vmatprep.mubr.bf16.mxu0 0
  %566 = vmatmul.mubr.bf16.gmra.mrb[0].mxu0 %v411
  %v567 = vpop.f32.mrb[0].mxu0
  %v568 = vadd.f32 %v443, %v567
  %v569 = vpop.f32.mrb[0].mxu0
  %v570 = vpop.f32.mrb[0].mxu0
  %v571 = vadd.f32 %v443, %v570
  %v572 = vpop.f32.mrb[0].mxu0
  %573 = vmatprep.mubr.bf16.mxu0 0
  %574 = vmatmul.mubr.bf16.gmra.mrb[0].mxu0 %v412
  %v575 = vpop.f32.mrb[0].mxu0
  %v576 = vadd.f32 %v443, %v575
  %v577 = vpop.f32.mrb[0].mxu0
  %v578 = vpop.f32.mrb[0].mxu0
  %v579 = vadd.f32 %v443, %v578
  %v580 = vpop.f32.mrb[0].mxu0
  %581 = vmatprep.mubr.bf16.mxu0 0
  %582 = vmatmul.mubr.bf16.gmra.mrb[0].mxu0 %v413
  %v583 = vpop.f32.mrb[0].mxu0
  %v584 = vadd.f32 %v443, %v583
  %v585 = vpop.f32.mrb[0].mxu0
  %v586 = vpop.f32.mrb[0].mxu0
  %v587 = vadd.f32 %v443, %v586
  %v588 = vpop.f32.mrb[0].mxu0
  %589 = vmatprep.mubr.bf16.mxu0 0
  %590 = vmatmul.mubr.bf16.gmra.mrb[0].mxu0 %v414
  %v591 = vpop.f32.mrb[0].mxu0
  %v592 = vadd.f32 %v443, %v591
  %v593 = vpop.f32.mrb[0].mxu0
  %v594 = vpop.f32.mrb[0].mxu0
  %v595 = vadd.f32 %v443, %v594
  %v596 = vpop.f32.mrb[0].mxu0
  %597 = vmatprep.mubr.bf16.mxu0 0
  %598 = vmatmul.mubr.bf16.gmra.mrb[0].mxu0 %v415
  %v599 = vpop.f32.mrb[0].mxu0
  %v600 = vadd.f32 %v443, %v599
  %v601 = vpop.f32.mrb[0].mxu0
  %v602 = vpop.f32.mrb[0].mxu0
  %v603 = vadd.f32 %v443, %v602
  %v604 = vpop.f32.mrb[0].mxu0
  %605 = vmatprep.mubr.bf16.mxu0 0
  %606 = vmatmul.mubr.bf16.gmra.mrb[0].mxu0 %v416
  %v607 = vpop.f32.mrb[0].mxu0
  %v608 = vadd.f32 %v443, %v607
  %v609 = vpop.f32.mrb[0].mxu0
  %v610 = vpop.f32.mrb[0].mxu0
  %v611 = vadd.f32 %v443, %v610
  %v612 = vpop.f32.mrb[0].mxu0
  %613 = vmatprep.mubr.bf16.mxu0 0
  %614 = vmatmul.mubr.bf16.gmra.mrb[0].mxu0 %v417
  %v615 = vpop.f32.mrb[0].mxu0
  %v616 = vadd.f32 %v443, %v615
  %v617 = vpop.f32.mrb[0].mxu0
  %v618 = vpop.f32.mrb[0].mxu0
  %v619 = vadd.f32 %v443, %v618
  %v620 = vpop.f32.mrb[0].mxu0
  %621 = vmatprep.mubr.bf16.mxu0 0
  %622 = vmatmul.mubr.bf16.gmra.mrb[0].mxu0 %v418
  %v623 = vpop.f32.mrb[0].mxu0
  %v624 = vadd.f32 %v443, %v623
  %v625 = vpop.f32.mrb[0].mxu0
  %v626 = vpop.f32.mrb[0].mxu0
  %v627 = vadd.f32 %v443, %v626
  %v628 = vpop.f32.mrb[0].mxu0
  %629 = vmatprep.mubr.bf16.mxu0 0
  %630 = vmatmul.mubr.bf16.gmra.mrb[0].mxu0 %v419
  %v631 = vpop.f32.mrb[0].mxu0
  %v632 = vadd.f32 %v443, %v631
  %v633 = vpop.f32.mrb[0].mxu0
  %v634 = vpop.f32.mrb[0].mxu0
  %v635 = vadd.f32 %v443, %v634
  %v636 = vpop.f32.mrb[0].mxu0
  %637 = vmatprep.mubr.bf16.mxu0 0
  %638 = vmatmul.mubr.bf16.gmra.mrb[0].mxu0 %v420
  %v639 = vpop.f32.mrb[0].mxu0
  %v640 = vadd.f32 %v443, %v639
  %v641 = vpop.f32.mrb[0].mxu0
  %v642 = vpop.f32.mrb[0].mxu0
  %v643 = vadd.f32 %v443, %v642
  %v644 = vpop.f32.mrb[0].mxu0
  %645 = vmatprep.mubr.bf16.mxu0 0
  %646 = vmatmul.mubr.bf16.gmra.mrb[0].mxu0 %v421
  %v647 = vpop.f32.mrb[0].mxu0
  %v648 = vadd.f32 %v443, %v647
  %v649 = vpop.f32.mrb[0].mxu0
  %v650 = vpop.f32.mrb[0].mxu0
  %v651 = vadd.f32 %v443, %v650
  %v652 = vpop.f32.mrb[0].mxu0
  %653 = vdwg.mxu0
  %v654 = vmax.f32 %v528, 0.0
  %v655 = vmax.f32 %v531, 0.0
  %v656 = vmax.f32 %v536, 0.0
  %v657 = vmax.f32 %v539, 0.0
  %v658 = vmax.f32 %v544, 0.0
  %v659 = vmax.f32 %v547, 0.0
  %v660 = vmax.f32 %v552, 0.0
  %v661 = vmax.f32 %v555, 0.0
  %v662 = vmax.f32 %v560, 0.0
  %v663 = vmax.f32 %v563, 0.0
  %v664 = vmax.f32 %v568, 0.0
  %v665 = vmax.f32 %v571, 0.0
  %v666 = vmax.f32 %v576, 0.0
  %v667 = vmax.f32 %v579, 0.0
  %v668 = vmax.f32 %v584, 0.0
  %v669 = vmax.f32 %v587, 0.0
  %v670 = vmax.f32 %v592, 0.0
  %v671 = vmax.f32 %v595, 0.0
  %v672 = vmax.f32 %v600, 0.0
  %v673 = vmax.f32 %v603, 0.0
  %v674 = vmax.f32 %v608, 0.0
  %v675 = vmax.f32 %v611, 0.0
  %v676 = vmax.f32 %v616, 0.0
  %v677 = vmax.f32 %v619, 0.0
  %v678 = vmax.f32 %v624, 0.0
  %v679 = vmax.f32 %v627, 0.0
  %v680 = vmax.f32 %v632, 0.0
  %v681 = vmax.f32 %v635, 0.0
  %v682 = vmax.f32 %v640, 0.0
  %v683 = vmax.f32 %v643, 0.0
  %v684 = vmax.f32 %v648, 0.0
  %v685 = vmax.f32 %v651, 0.0
  %v686 = vpack.c.bf16 %v655, %v654
  %v687 = vpack.c.bf16 %v657, %v656
  %v688 = vpack.c.bf16 %v659, %v658
  %v689 = vpack.c.bf16 %v661, %v660
  %v690 = vpack.c.bf16 %v663, %v662
  %v691 = vpack.c.bf16 %v665, %v664
  %v692 = vpack.c.bf16 %v667, %v666
  %v693 = vpack.c.bf16 %v669, %v668
  %v694 = vpack.c.bf16 %v671, %v670
  %v695 = vpack.c.bf16 %v673, %v672
  %v696 = vpack.c.bf16 %v675, %v674
  %v697 = vpack.c.bf16 %v677, %v676
  %v698 = vpack.c.bf16 %v679, %v678
  %v699 = vpack.c.bf16 %v681, %v680
  %v700 = vpack.c.bf16 %v683, %v682
  %v701 = vpack.c.bf16 %v685, %v684
  %v702 = vld [vmem:[%s5] sm:$0xf]
  %v703 = vld [vmem:[%s5 + $0x4] sm:$0xf]
  %v704 = vld [vmem:[%s5 + $0x8] sm:$0xf]
  %v705 = vld [vmem:[%s5 + $0xc] sm:$0xf]
  %v706 = vld [vmem:[%s5 + $0x10] sm:$0xf]
  %v707 = vld [vmem:[%s5 + $0x14] sm:$0xf]
  %v708 = vld [vmem:[%s5 + $0x18] sm:$0xf]
  %v709 = vld [vmem:[%s5 + $0x1c] sm:$0xf]
  %v710 = vld [vmem:[%s5 + $0x20] sm:$0xf]
  %v711 = vld [vmem:[%s5 + $0x24] sm:$0xf]
  %v712 = vld [vmem:[%s5 + $0x28] sm:$0xf]
  %v713 = vld [vmem:[%s5 + $0x2c] sm:$0xf]
  %v714 = vld [vmem:[%s5 + $0x30] sm:$0xf]
  %v715 = vld [vmem:[%s5 + $0x34] sm:$0xf]
  %v716 = vld [vmem:[%s5 + $0x38] sm:$0xf]
  %v717 = vld [vmem:[%s5 + $0x3c] sm:$0xf]
  %v718 = vld [vmem:[#allocation2] sm:$0x1]
  %v720 = vlaneseq
  %v721 = vshrl.u32 %v720, 7
  %v722 = vsub.s32 0, %v721
  %v723 = vrot.slane %v718, %v722
  %v741 = vunpack.c.l.b16 %v702
  %v742 = vunpack.c.l.b16 %v703
  %v743 = vunpack.c.l.b16 %v704
  %v744 = vunpack.c.l.b16 %v705
  %v745 = vunpack.c.l.b16 %v706
  %v746 = vunpack.c.l.b16 %v707
  %v747 = vunpack.c.l.b16 %v708
  %v748 = vunpack.c.l.b16 %v709
  %v749 = vunpack.c.l.b16 %v710
  %v750 = vunpack.c.l.b16 %v711
  %v751 = vunpack.c.l.b16 %v712
  %v752 = vunpack.c.l.b16 %v713
  %v753 = vunpack.c.l.b16 %v714
  %v754 = vunpack.c.l.b16 %v715
  %v755 = vunpack.c.l.b16 %v716
  %v756 = vunpack.c.l.b16 %v717
  %v757 = vpack.c.b16 %v742, %v741
  %v758 = vpack.c.b16 %v744, %v743
  %v759 = vpack.c.b16 %v746, %v745
  %v760 = vpack.c.b16 %v748, %v747
  %v761 = vpack.c.b16 %v750, %v749
  %v762 = vpack.c.b16 %v752, %v751
  %v763 = vpack.c.b16 %v754, %v753
  %v764 = vpack.c.b16 %v756, %v755
  %773 = vmatprep.subr.bf16.mxu0 0
  %774 = vmatpush1.bf16.msra.mxu0 %v757
  %775 = vmatprep.subr.bf16.mxu0 0
  %776 = vmatpush1.bf16.msra.mxu0 %v758
  %777 = vmatprep.subr.bf16.mxu0 0
  %778 = vmatpush1.bf16.msra.mxu0 %v759
  %779 = vmatprep.subr.bf16.mxu0 0
  %780 = vmatpush1.bf16.msra.mxu0 %v760
  %781 = vmatprep.subr.bf16.mxu0 0
  %782 = vmatpush1.bf16.msra.mxu0 %v761
  %783 = vmatprep.subr.bf16.mxu0 0
  %784 = vmatpush1.bf16.msra.mxu0 %v762
  %785 = vmatprep.subr.bf16.mxu0 0
  %786 = vmatpush1.bf16.msra.mxu0 %v763
  %787 = vmatprep.subr.bf16.mxu0 0
  %788 = vmatpush1.bf16.msra.mxu0 %v764
  %789 = vmatprep.subr.bf16.mxu0 0
  %790 = vmatpush1.bf16.msra.mxu0 0
  %791 = vmatprep.subr.bf16.mxu0 0
  %792 = vmatpush1.bf16.msra.mxu0 0
  %793 = vmatprep.subr.bf16.mxu0 0
  %794 = vmatpush1.bf16.msra.mxu0 0
  %795 = vmatprep.subr.bf16.mxu0 0
  %796 = vmatpush1.bf16.msra.mxu0 0
  %797 = vmatprep.subr.bf16.mxu0 0
  %798 = vmatpush1.bf16.msra.mxu0 0
  %799 = vmatprep.subr.bf16.mxu0 0
  %800 = vmatpush1.bf16.msra.mxu0 0
  %801 = vmatprep.subr.bf16.mxu0 0
  %802 = vmatpush1.bf16.msra.mxu0 0
  %803 = vmatprep.subr.bf16.mxu0 0
  %804 = vmatpush1.bf16.msra.mxu0 0
  %805 = vmatprep.mubr.bf16.mxu0 0
  %806 = vmatmul.mubr.bf16.gmra.mrb[0].mxu0 %v686
  %v807 = vpop.f32.mrb[0].mxu0
  %v808 = vadd.f32 %v723, %v807
  %v809 = vpop.f32.mrb[0].mxu0
  %v810 = vpop.f32.mrb[0].mxu0
  %v811 = vadd.f32 %v723, %v810
  %v812 = vpop.f32.mrb[0].mxu0
  %813 = vmatprep.mubr.bf16.mxu0 0
  %814 = vmatmul.mubr.bf16.gmra.mrb[0].mxu0 %v687
  %v815 = vpop.f32.mrb[0].mxu0
  %v816 = vadd.f32 %v723, %v815
  %v817 = vpop.f32.mrb[0].mxu0
  %v818 = vpop.f32.mrb[0].mxu0
  %v819 = vadd.f32 %v723, %v818
  %v820 = vpop.f32.mrb[0].mxu0
  %821 = vmatprep.mubr.bf16.mxu0 0
  %822 = vmatmul.mubr.bf16.gmra.mrb[0].mxu0 %v688
  %v823 = vpop.f32.mrb[0].mxu0
  %v824 = vadd.f32 %v723, %v823
  %v825 = vpop.f32.mrb[0].mxu0
  %v826 = vpop.f32.mrb[0].mxu0
  %v827 = vadd.f32 %v723, %v826
  %v828 = vpop.f32.mrb[0].mxu0
  %829 = vmatprep.mubr.bf16.mxu0 0
  %830 = vmatmul.mubr.bf16.gmra.mrb[0].mxu0 %v689
  %v831 = vpop.f32.mrb[0].mxu0
  %v832 = vadd.f32 %v723, %v831
  %v833 = vpop.f32.mrb[0].mxu0
  %v834 = vpop.f32.mrb[0].mxu0
  %v835 = vadd.f32 %v723, %v834
  %v836 = vpop.f32.mrb[0].mxu0
  %837 = vmatprep.mubr.bf16.mxu0 0
  %838 = vmatmul.mubr.bf16.gmra.mrb[0].mxu0 %v690
  %v839 = vpop.f32.mrb[0].mxu0
  %v840 = vadd.f32 %v723, %v839
  %v841 = vpop.f32.mrb[0].mxu0
  %v842 = vpop.f32.mrb[0].mxu0
  %v843 = vadd.f32 %v723, %v842
  %v844 = vpop.f32.mrb[0].mxu0
  %845 = vmatprep.mubr.bf16.mxu0 0
  %846 = vmatmul.mubr.bf16.gmra.mrb[0].mxu0 %v691
  %v847 = vpop.f32.mrb[0].mxu0
  %v848 = vadd.f32 %v723, %v847
  %v849 = vpop.f32.mrb[0].mxu0
  %v850 = vpop.f32.mrb[0].mxu0
  %v851 = vadd.f32 %v723, %v850
  %v852 = vpop.f32.mrb[0].mxu0
  %853 = vmatprep.mubr.bf16.mxu0 0
  %854 = vmatmul.mubr.bf16.gmra.mrb[0].mxu0 %v692
  %v855 = vpop.f32.mrb[0].mxu0
  %v856 = vadd.f32 %v723, %v855
  %v857 = vpop.f32.mrb[0].mxu0
  %v858 = vpop.f32.mrb[0].mxu0
  %v859 = vadd.f32 %v723, %v858
  %v860 = vpop.f32.mrb[0].mxu0
  %861 = vmatprep.mubr.bf16.mxu0 0
  %862 = vmatmul.mubr.bf16.gmra.mrb[0].mxu0 %v693
  %v863 = vpop.f32.mrb[0].mxu0
  %v864 = vadd.f32 %v723, %v863
  %v865 = vpop.f32.mrb[0].mxu0
  %v866 = vpop.f32.mrb[0].mxu0
  %v867 = vadd.f32 %v723, %v866
  %v868 = vpop.f32.mrb[0].mxu0
  %869 = vmatprep.mubr.bf16.mxu0 0
  %870 = vmatmul.mubr.bf16.gmra.mrb[0].mxu0 %v694
  %v871 = vpop.f32.mrb[0].mxu0
  %v872 = vadd.f32 %v723, %v871
  %v873 = vpop.f32.mrb[0].mxu0
  %v874 = vpop.f32.mrb[0].mxu0
  %v875 = vadd.f32 %v723, %v874
  %v876 = vpop.f32.mrb[0].mxu0
  %877 = vmatprep.mubr.bf16.mxu0 0
  %878 = vmatmul.mubr.bf16.gmra.mrb[0].mxu0 %v695
  %v879 = vpop.f32.mrb[0].mxu0
  %v880 = vadd.f32 %v723, %v879
  %v881 = vpop.f32.mrb[0].mxu0
  %v882 = vpop.f32.mrb[0].mxu0
  %v883 = vadd.f32 %v723, %v882
  %v884 = vpop.f32.mrb[0].mxu0
  %885 = vmatprep.mubr.bf16.mxu0 0
  %886 = vmatmul.mubr.bf16.gmra.mrb[0].mxu0 %v696
  %v887 = vpop.f32.mrb[0].mxu0
  %v888 = vadd.f32 %v723, %v887
  %v889 = vpop.f32.mrb[0].mxu0
  %v890 = vpop.f32.mrb[0].mxu0
  %v891 = vadd.f32 %v723, %v890
  %v892 = vpop.f32.mrb[0].mxu0
  %893 = vmatprep.mubr.bf16.mxu0 0
  %894 = vmatmul.mubr.bf16.gmra.mrb[0].mxu0 %v697
  %v895 = vpop.f32.mrb[0].mxu0
  %v896 = vadd.f32 %v723, %v895
  %v897 = vpop.f32.mrb[0].mxu0
  %v898 = vpop.f32.mrb[0].mxu0
  %v899 = vadd.f32 %v723, %v898
  %v900 = vpop.f32.mrb[0].mxu0
  %901 = vmatprep.mubr.bf16.mxu0 0
  %902 = vmatmul.mubr.bf16.gmra.mrb[0].mxu0 %v698
  %v903 = vpop.f32.mrb[0].mxu0
  %v904 = vadd.f32 %v723, %v903
  %v905 = vpop.f32.mrb[0].mxu0
  %v906 = vpop.f32.mrb[0].mxu0
  %v907 = vadd.f32 %v723, %v906
  %v908 = vpop.f32.mrb[0].mxu0
  %909 = vmatprep.mubr.bf16.mxu0 0
  %910 = vmatmul.mubr.bf16.gmra.mrb[0].mxu0 %v699
  %v911 = vpop.f32.mrb[0].mxu0
  %v912 = vadd.f32 %v723, %v911
  %v913 = vpop.f32.mrb[0].mxu0
  %v914 = vpop.f32.mrb[0].mxu0
  %v915 = vadd.f32 %v723, %v914
  %v916 = vpop.f32.mrb[0].mxu0
  %917 = vmatprep.mubr.bf16.mxu0 0
  %918 = vmatmul.mubr.bf16.gmra.mrb[0].mxu0 %v700
  %v919 = vpop.f32.mrb[0].mxu0
  %v920 = vadd.f32 %v723, %v919
  %v921 = vpop.f32.mrb[0].mxu0
  %v922 = vpop.f32.mrb[0].mxu0
  %v923 = vadd.f32 %v723, %v922
  %v924 = vpop.f32.mrb[0].mxu0
  %925 = vmatprep.mubr.bf16.mxu0 0
  %926 = vmatmul.mubr.bf16.gmra.mrb[0].mxu0 %v701
  %v927 = vpop.f32.mrb[0].mxu0
  %v928 = vadd.f32 %v723, %v927
  %v929 = vpop.f32.mrb[0].mxu0
  %v930 = vpop.f32.mrb[0].mxu0
  %v931 = vadd.f32 %v723, %v930
  %v932 = vpop.f32.mrb[0].mxu0
  %933 = vdwg.mxu0
  %vm934 = vcmask 7168
  %935 = vst.msk [vmem:[%s7] sm:$0xff] %vm934, %v808
  %936 = vst.msk [vmem:[%s7 + $0x8] sm:$0xff] %vm934, %v811
  %937 = vst.msk [vmem:[%s7 + $0x10] sm:$0xff] %vm934, %v816
  %938 = vst.msk [vmem:[%s7 + $0x18] sm:$0xff] %vm934, %v819
  %939 = vst.msk [vmem:[%s7 + $0x20] sm:$0xff] %vm934, %v824
  %940 = vst.msk [vmem:[%s7 + $0x28] sm:$0xff] %vm934, %v827
  %941 = vst.msk [vmem:[%s7 + $0x30] sm:$0xff] %vm934, %v832
  %942 = vst.msk [vmem:[%s7 + $0x38] sm:$0xff] %vm934, %v835
  %943 = vst.msk [vmem:[%s7 + $0x40] sm:$0xff] %vm934, %v840
  %944 = vst.msk [vmem:[%s7 + $0x48] sm:$0xff] %vm934, %v843
  %945 = vst.msk [vmem:[%s7 + $0x50] sm:$0xff] %vm934, %v848
  %946 = vst.msk [vmem:[%s7 + $0x58] sm:$0xff] %vm934, %v851
  %947 = vst.msk [vmem:[%s7 + $0x60] sm:$0xff] %vm934, %v856
  %948 = vst.msk [vmem:[%s7 + $0x68] sm:$0xff] %vm934, %v859
  %949 = vst.msk [vmem:[%s7 + $0x70] sm:$0xff] %vm934, %v864
  %950 = vst.msk [vmem:[%s7 + $0x78] sm:$0xff] %vm934, %v867
  %951 = vst.msk [vmem:[%s7 + $0x80] sm:$0xff] %vm934, %v872
  %952 = vst.msk [vmem:[%s7 + $0x88] sm:$0xff] %vm934, %v875
  %953 = vst.msk [vmem:[%s7 + $0x90] sm:$0xff] %vm934, %v880
  %954 = vst.msk [vmem:[%s7 + $0x98] sm:$0xff] %vm934, %v883
  %955 = vst.msk [vmem:[%s7 + $0xa0] sm:$0xff] %vm934, %v888
  %956 = vst.msk [vmem:[%s7 + $0xa8] sm:$0xff] %vm934, %v891
  %957 = vst.msk [vmem:[%s7 + $0xb0] sm:$0xff] %vm934, %v896
  %958 = vst.msk [vmem:[%s7 + $0xb8] sm:$0xff] %vm934, %v899
  %959 = vst.msk [vmem:[%s7 + $0xc0] sm:$0xff] %vm934, %v904
  %960 = vst.msk [vmem:[%s7 + $0xc8] sm:$0xff] %vm934, %v907
  %961 = vst.msk [vmem:[%s7 + $0xd0] sm:$0xff] %vm934, %v912
  %962 = vst.msk [vmem:[%s7 + $0xd8] sm:$0xff] %vm934, %v915
  %963 = vst.msk [vmem:[%s7 + $0xe0] sm:$0xff] %vm934, %v920
  %964 = vst.msk [vmem:[%s7 + $0xe8] sm:$0xff] %vm934, %v923
  %965 = vst.msk [vmem:[%s7 + $0xf0] sm:$0xff] %vm934, %v928
  %966 = vst.msk [vmem:[%s7 + $0xf8] sm:$0xff] %vm934, %v931
  // Predicated region
  $region30: #{nnet_forward.1} parent=0 // pred_check
    _
  $region31: #{nnet_forward.1} parent=0 // pred_check_branch
    %968 = sbr.rel (0) target = $region33
  $region32: #{nnet_forward.1} parent=0 // pred_region
    _
  $region33: #{nnet_forward.1} parent=0 // pred_fallthru
    _
  // Predicated region
  $region34: #{nnet_forward.1} parent=0 // pred_check
    _
  $region35: #{nnet_forward.1} parent=0 // pred_check_branch
    %970 = sbr.rel (0) target = $region37
  $region36: #{nnet_forward.1} parent=0 // pred_region
    _
  $region37: #{nnet_forward.1} parent=0 // pred_fallthru
    _

</llo_original>
